<compile_context>
chip_gen: v7x
topology: tpu7x:2x2x1
jax: 0.10.0
libtpu: 0.0.40
codegen_flags: <defaults>
</compile_context>

<pallas_src>
import functools

import jax
import jax.numpy as jnp
from jax.experimental import pallas as pl
from jax.experimental.pallas import tpu as pltpu


_TARGET_X_TILE_BYTES = 2 * 1024 * 1024   # >=1 MiB tiles reach ~85% of HBM roofline
_ROW_ALIGN = 8                           # f32 sublane packing of the streamed x tile


def _round_up(n: int, m: int) -> int:
    return (n + m - 1) // m * m


def _vmem_limit_bytes() -> int:
    """~3/4 of this generation's VMEM: ~48 MiB on v7x, ~96 MiB on v5e/v6e."""
    cap = 64 * 1024 * 1024  # conservative fallback = v7x per-TC capacity
    try:
        cap = int(getattr(pltpu.get_tpu_info(), "vmem_capacity_bytes", cap))
    except Exception:
        pass
    return (cap * 3) // 4


def _choose_block_rows(B: int, D: int, H: int, w_itemsize: int, vmem_limit: int) -> int:
    """Byte-sized batch tile: ~2 MiB of f32 x, clamped by the VMEM budget."""
    tb = max(_ROW_ALIGN, _TARGET_X_TILE_BYTES // (D * 4))
    # Per-row VMEM estimate: x f32 double buffer + in-kernel bf16 copy + h f32
    # + (tb, 1) f32 intermediates / output double buffer (lane-padded to 128).
    bytes_per_row = 2 * D * 4 + D * w_itemsize + H * 6 + 4 * 128 * 4
    # Resident weights, conservatively counted double-buffered (default pipelining).
    weight_bytes = 2 * (D * H * w_itemsize + 2 * H * 4) + 4096
    tb = min(tb, max(_ROW_ALIGN, (vmem_limit // 2 - weight_bytes) // bytes_per_row))
    # Keep nb >= 2 so v7x's two TensorCores both get batch blocks, as long as
    # each half still streams >= ~1 MiB of x.
    if B * D * 4 >= _TARGET_X_TILE_BYTES:
        tb = min(tb, _round_up(pl.cdiv(B, 2), _ROW_ALIGN))
    return max(_ROW_ALIGN, _round_up(tb, _ROW_ALIGN))


def mlp_kernel(x_ref, w1_ref, b1_ref, w2_ref, b2_ref, o_ref):
    # In-kernel cast of the streamed f32 x tile to the MXU input dtype (bf16 by
    # default): no separate XLA cast/pad pass over the dominant x HBM stream.
    x = x_ref[...].astype(w1_ref.dtype)

    # Layer 1 on the MXU: (TB, D) @ (D, H) -> (TB, H), f32 accumulation.
    h = jnp.dot(x, w1_ref[...], preferred_element_type=jnp.float32)
    h = jnp.maximum(h + b1_ref[...], 0.0)                             # bias + ReLU (f32, VPU)

    # Layer 2 (H -> 1): VPU broadcast-multiply + XLU lane reduce (no N=1 matmul).
    z = jnp.sum(h * w2_ref[...], axis=-1, keepdims=True) + b2_ref[0]  # (TB, 1)

    # Numerically stable LogSigmoid: min(z, 0) - log1p(exp(-|z|)) (matches torch).
    o_ref[...] = jnp.minimum(z, 0.0) - jnp.log1p(jnp.exp(-jnp.abs(z)))


@functools.partial(jax.jit, static_argnames=("block_rows", "use_bf16"))
def mlp_forward(x, w1, b1, w2, b2, *, block_rows=None, use_bf16=True):
    """Fused MLP forward: LogSigmoid(ReLU(x @ w1 + b1) @ w2 + b2).

    x:  (B, D) float32 (streamed as-is; cast to bf16 inside the kernel)
    w1: (D, H) first Linear weight, pre-transposed to x-major
    b1: (H,) or (1, H)
    w2: (H,) / (H, 1) / (1, H)  second Linear weight
    b2: scalar-like
    returns (B, 1) float32
    """
    B, D = x.shape
    H = w1.shape[1]

    in_dtype = jnp.bfloat16 if use_bf16 else jnp.float32
    w_itemsize = jnp.dtype(in_dtype).itemsize

    # Weight normalization: all no-ops when prepare_params() was used (recommended).
    w1_in = jnp.asarray(w1).astype(in_dtype)
    b1_in = jnp.asarray(b1, jnp.float32).reshape(1, H)
    w2_row = jnp.asarray(w2, jnp.float32).reshape(1, H)   # layer-2 weights as a lane row
    b2_s = jnp.asarray(b2, jnp.float32).reshape(1)        # scalar -> SMEM

    vmem_limit = _vmem_limit_bytes()
    if block_rows is not None:
        tb = _round_up(block_rows, _ROW_ALIGN)
    else:
        tb = _choose_block_rows(B, D, H, w_itemsize, vmem_limit)
    tb = min(tb, _round_up(B, _ROW_ALIGN))
    nb = pl.cdiv(B, tb)   # ragged last block is masked by Pallas

    cost = pl.CostEstimate(
        flops=2 * B * D * H + 4 * B * H + 6 * B,
        transcendentals=2 * B,                             # exp + log1p per row
        bytes_accessed=B * D * 4 + D * H * w_itemsize + 2 * H * 4 + 4 + B * 4,
    )

    out = pl.pallas_call(
        mlp_kernel,
        out_shape=jax.ShapeDtypeStruct((B, 1), jnp.float32),
        grid_spec=pltpu.PrefetchScalarGridSpec(
            num_scalar_prefetch=0,
            grid=(nb,),
            in_specs=[
                pl.BlockSpec((tb, D), lambda i: (i, 0)),             # x: f32 stream, double-buffered
                pl.BlockSpec((D, H), lambda i: (0, 0)),              # w1: VMEM resident
                pl.BlockSpec((1, H), lambda i: (0, 0)),              # b1: VMEM resident
                pl.BlockSpec((1, H), lambda i: (0, 0)),              # w2 row: VMEM resident
                pl.BlockSpec(memory_space=pltpu.MemorySpace.SMEM),   # b2: SMEM scalar
            ],
            out_specs=pl.BlockSpec((tb, 1), lambda i: (i, 0)),
        ),
        compiler_params=pltpu.CompilerParams(
            # Independent batch blocks -> megacore sharding on v7x; free on v5e/v6e.
            dimension_semantics=("parallel",),
            # Per-generation budget: ~48 MiB on v7x (64 MiB/TC), ~96 MiB on v5e/v6e.
            vmem_limit_bytes=vmem_limit,
        ),
        cost_estimate=cost,
    )(x, w1_in, b1_in, w2_row, b2_s)

    return out


def prepare_params(w1, b1, w2, b2, use_bf16=True):
    """One-time weight preparation (bf16 cast / reshapes) outside the jitted wrapper."""
    in_dtype = jnp.bfloat16 if use_bf16 else jnp.float32
    H = w1.shape[1]
    return (jnp.asarray(w1).astype(in_dtype),
            jnp.asarray(b1, jnp.float32).reshape(1, H),
            jnp.asarray(w2, jnp.float32).reshape(1, H),
            jnp.asarray(b2, jnp.float32).reshape(1))


def mlp_reference(x, w1, b1, w2, b2, *, use_bf16=True):
    """Plain-JAX reference computed on the same (optionally bf16-rounded) inputs."""
    in_dtype = jnp.bfloat16 if use_bf16 else jnp.float32
    xr = x.astype(in_dtype).astype(jnp.float32)
    w1r = jnp.asarray(w1).astype(in_dtype).astype(jnp.float32)
    h = jnp.maximum(xr @ w1r + jnp.asarray(b1, jnp.float32).reshape(1, -1), 0.0)
    z = h @ jnp.asarray(w2, jnp.float32).reshape(-1, 1) \
        + jnp.asarray(b2, jnp.float32).reshape(1, 1)
    return jnp.minimum(z, 0.0) - jnp.log1p(jnp.exp(-jnp.abs(z)))


def init_params(key, input_size, hidden_size):
    """nn.Linear-style uniform(-1/sqrt(fan_in), 1/sqrt(fan_in)) init, pre-transposed."""
    k1, k2, k3, k4 = jax.random.split(key, 4)
    lim1 = 1.0 / jnp.sqrt(input_size)
    lim2 = 1.0 / jnp.sqrt(hidden_size)
    w1 = jax.random.uniform(k1, (input_size, hidden_size), jnp.float32, -lim1, lim1)
    b1 = jax.random.uniform(k2, (1, hidden_size), jnp.float32, -lim1, lim1)
    w2 = jax.random.uniform(k3, (hidden_size, 1), jnp.float32, -lim2, lim2)
    b2 = jax.random.uniform(k4, (1, 1), jnp.float32, -lim2, lim2)
    return w1, b1, w2, b2


if __name__ == "__main__":
    key = jax.random.PRNGKey(0)
    kx1, kp1, kx2, kp2 = jax.random.split(key, 4)

    # Case 1: small shapes consistent with the module (batch=8, D=32, H=32).
    batch, input_size, hidden_size = 8, 32, 32
    x = jax.random.normal(kx1, (batch, input_size), jnp.float32)
    raw = init_params(kp1, input_size, hidden_size)
    params = prepare_params(*raw)            # one-time bf16 weight cast (outside jit)
    out = mlp_forward(x, *params)            # auto byte-sized tile, single block
    jax.block_until_ready(out)
    ref = mlp_reference(x, *raw)
    assert out.shape == (batch, 1)
    assert jnp.allclose(out, ref, atol=1e-5, rtol=1e-5), float(jnp.max(jnp.abs(out - ref)))

    # Case 2: multi-block, pipelined path with a ragged last block (300 = 2*128 + 44).
    batch2, d2, h2 = 300, 32, 64
    x2 = jax.random.normal(kx2, (batch2, d2), jnp.float32)
    raw2 = init_params(kp2, d2, h2)
    params2 = prepare_params(*raw2)
    out2 = mlp_forward(x2, *params2, block_rows=128)
    jax.block_until_ready(out2)
    ref2 = mlp_reference(x2, *raw2)
    assert out2.shape == (batch2, 1)
    assert jnp.allclose(out2, ref2, atol=1e-5, rtol=1e-5), float(jnp.max(jnp.abs(out2 - ref2)))

    print("KERNEL_OK")
</pallas_src>

<mosaic_0001>
module attributes {stable_mosaic.version = 11 : i64} {
  func.func @mlp_kernel(%arg0: i32, %arg1: memref<8x32xf32, #tpu.memory_space<vmem>>, %arg2: memref<32x32xbf16, #tpu.memory_space<vmem>>, %arg3: memref<1x32xf32, #tpu.memory_space<vmem>>, %arg4: memref<1x32xf32, #tpu.memory_space<vmem>>, %arg5: memref<1xf32, #tpu.memory_space<smem>>, %arg6: memref<8x1xf32, #tpu.memory_space<vmem>>) attributes {dimension_semantics = [#tpu.dimension_semantics<parallel>], iteration_bounds = array<i64: 1>, scalar_prefetch = 0 : i64, scratch_operands = 0 : i64, tpu.core_type = #tpu.core_type<tc>, window_params = [{transform_indices = @transform_0, window_bounds = array<i64: 8, 32>}, {pipeline_mode = #tpu.pipeline_mode<synchronous>, transform_indices = @transform_1, window_bounds = array<i64: 32, 32>}, {pipeline_mode = #tpu.pipeline_mode<synchronous>, transform_indices = @transform_2, window_bounds = array<i64: 1, 32>}, {pipeline_mode = #tpu.pipeline_mode<synchronous>, transform_indices = @transform_3, window_bounds = array<i64: 1, 32>}, {transform_indices = @transform_4, window_bounds = array<i64: 1>}, {transform_indices = @transform_5, window_bounds = array<i64: 8, 1>}]} {
    %c0 = arith.constant 0 : index
    %c0_0 = arith.constant 0 : index
    %0 = vector.load %arg1[%c0, %c0_0] : memref<8x32xf32, #tpu.memory_space<vmem>>, vector<8x32xf32>
    %1 = arith.truncf %0 : vector<8x32xf32> to vector<8x32xbf16>
    %c0_1 = arith.constant 0 : index
    %c0_2 = arith.constant 0 : index
    %2 = vector.load %arg2[%c0_1, %c0_2] : memref<32x32xbf16, #tpu.memory_space<vmem>>, vector<32x32xbf16>
    %cst = arith.constant dense<0.000000e+00> : vector<8x32xf32>
    %3 = tpu.matmul %1, %2, %cst {dimension_numbers = #tpu.dot_dimension_numbers<[1], [0], [0], [1], [0, 0, 1, 1], [], []>} : vector<8x32xbf16>, vector<32x32xbf16>, vector<8x32xf32> -> vector<8x32xf32>
    %c0_3 = arith.constant 0 : index
    %c0_4 = arith.constant 0 : index
    %4 = vector.load %arg3[%c0_3, %c0_4] : memref<1x32xf32, #tpu.memory_space<vmem>>, vector<1x32xf32>
    %5 = vector.broadcast %4 : vector<1x32xf32> to vector<8x32xf32>
    %6 = arith.addf %3, %5 : vector<8x32xf32>
    %cst_5 = arith.constant 0.000000e+00 : f32
    %7 = vector.broadcast %cst_5 : f32 to vector<8x32xf32>
    %8 = arith.maximumf %6, %7 : vector<8x32xf32>
    %c0_6 = arith.constant 0 : index
    %c0_7 = arith.constant 0 : index
    %9 = vector.load %arg4[%c0_6, %c0_7] : memref<1x32xf32, #tpu.memory_space<vmem>>, vector<1x32xf32>
    %10 = vector.broadcast %9 : vector<1x32xf32> to vector<8x32xf32>
    %11 = arith.mulf %8, %10 : vector<8x32xf32>
    %cst_8 = arith.constant dense<0.000000e+00> : vector<8xf32>
    %12 = vector.multi_reduction <add>, %11, %cst_8 [1] : vector<8x32xf32> to vector<8xf32>
    %13 = vector.shape_cast %12 : vector<8xf32> to vector<8x1xf32>
    %c0_9 = arith.constant 0 : index
    %14 = memref.load %arg5[%c0_9] : memref<1xf32, #tpu.memory_space<smem>>
    %15 = vector.broadcast %14 : f32 to vector<8x1xf32>
    %16 = arith.addf %13, %15 : vector<8x1xf32>
    %cst_10 = arith.constant 0.000000e+00 : f32
    %17 = vector.broadcast %cst_10 : f32 to vector<8x1xf32>
    %18 = arith.minimumf %16, %17 : vector<8x1xf32>
    %19 = math.absf %16 : vector<8x1xf32>
    %cst_11 = arith.constant 0.000000e+00 : f32
    %20 = vector.broadcast %cst_11 : f32 to vector<8x1xf32>
    %21 = arith.subf %20, %19 : vector<8x1xf32>
    %22 = math.exp %21 : vector<8x1xf32>
    %23 = math.log1p %22 : vector<8x1xf32>
    %24 = arith.subf %18, %23 : vector<8x1xf32>
    %c0_12 = arith.constant 0 : index
    %c0_13 = arith.constant 0 : index
    %25 = vector.load %arg6[%c0_12, %c0_13] : memref<8x1xf32, #tpu.memory_space<vmem>>, vector<8x1xf32>
    tpu.vector_store %arg6[%c0_12, %c0_13], %24 {strides = array<i32>} : memref<8x1xf32, #tpu.memory_space<vmem>>, vector<8x1xf32>,
    return
  }
  func.func @transform_0(%arg0: i32) -> (i32, i32) {
    %c0_i32 = arith.constant 0 : i32
    %c0_i32_0 = arith.constant 0 : i32
    return %arg0, %c0_i32 : i32, i32
  }
  func.func @transform_1(%arg0: i32) -> (i32, i32) {
    %c0_i32 = arith.constant 0 : i32
    %c0_i32_0 = arith.constant 0 : i32
    %c0_i32_1 = arith.constant 0 : i32
    return %c0_i32, %c0_i32_0 : i32, i32
  }
  func.func @transform_2(%arg0: i32) -> (i32, i32) {
    %c0_i32 = arith.constant 0 : i32
    %c0_i32_0 = arith.constant 0 : i32
    %c0_i32_1 = arith.constant 0 : i32
    return %c0_i32, %c0_i32_0 : i32, i32
  }
  func.func @transform_3(%arg0: i32) -> (i32, i32) {
    %c0_i32 = arith.constant 0 : i32
    %c0_i32_0 = arith.constant 0 : i32
    %c0_i32_1 = arith.constant 0 : i32
    return %c0_i32, %c0_i32_0 : i32, i32
  }
  func.func @transform_4(%arg0: i32) -> i32 {
    %c0_i32 = arith.constant 0 : i32
    %c0_i32_0 = arith.constant 0 : i32
    return %c0_i32 : i32
  }
  func.func @transform_5(%arg0: i32) -> (i32, i32) {
    %c0_i32 = arith.constant 0 : i32
    %c0_i32_0 = arith.constant 0 : i32
    return %arg0, %c0_i32 : i32, i32
  }
}

</mosaic_0001>

<llo_original>
// kernel: mlp_forward.1
$region0: #{mlp_forward.1}
  #allocation0 [shape = 'u32[]', space=smem, size = 0x4, offset = 0x4, fixed_abs, tag = 'smem constant byte address 0x4 - core index']
  #allocation1 [shape = 'u32[144,128]{1,0:T(1,128)}', space=vmem, size = 0x12000, scoped, tag = 'internal scratch']
  #allocation2 [shape = 'f32[1]{0:T(128)S(6)}', space=smem, size = 0x200, scoped, tag = 'scoped memory for mlp_forward.1']
  %s0 = inlined_call_operand.hbm [shape: f32[8,32], index: 0, kind: input, shape index: {}]
  %s1 = inlined_call_operand.hbm [shape: bf16[32,32], index: 1, kind: input, shape index: {}]
  %s2 = inlined_call_operand.vmem [shape: f32[1,32], index: 2, kind: input, shape index: {}]
  %s3 = inlined_call_operand.vmem [shape: f32[1,32], index: 3, kind: input, shape index: {}]
  %s4 = inlined_call_operand.<no memory space> [shape: f32[1], index: 4, kind: input, shape index: {}]
  %s5 = inlined_call_operand.vmem [shape: f32[8,1], index: 5, kind: output, shape index: {}]
  %s6 = sld [smem:[#allocation0]]
  $region38: #{mlp_forward.1} parent=0
    _
  %s8 = ssub.s32 1, %s6
  %s9 = scalar_select 0, %s8, %s6
  %10 = sst [smem:[#allocation2]] %s4
  $region1: #{mlp_forward.1} parent=0
    #allocation3 [shape = 'u8[4096]{0}', space=vmem, size = 0x1000, scoped, tag = 'input window, operand 0, single buffered']
    #allocation4 [shape = 's32[1]{0}', space=sflag, size = 0x4, scoped, tag = 'scoped memory for mlp_forward.1']
    #allocation5 [shape = 'u8[8192]{0}', space=vmem, size = 0x2000, scoped, tag = 'input window, operand 1, single buffered']
    #allocation6 [shape = 's32[1]{0}', space=sflag, size = 0x4, scoped, tag = 'scoped memory for mlp_forward.1']
    %11 = vsyncpa [#allocation4], 0
    %12 = vsyncpa [#allocation6], 0
    // Predicated region
    $region2: #{mlp_forward.1} parent=1 // pred_check
      _
    $region3: #{mlp_forward.1} parent=1 // pred_check_branch
      %14 = sbr.rel (0) target = $region5
    $region4: #{mlp_forward.1} parent=1 // pred_region
      %s16 = ssub.s32 128, 128
      %17 = vsyncadd [#allocation4], %s16
      %s19 = sshll.u32 [#allocation3], 4
      %s20 = int_to_ptr.vmem [resolvable:$true] %s19
      %22 = dma.hbm_to_vmem [thread:$0]  %s0, 128, %s20, [#allocation4]
    $region5: #{mlp_forward.1} parent=1 // pred_fallthru
      _
    // Predicated region
    $region6: #{mlp_forward.1} parent=1 // pred_check
      _
    $region7: #{mlp_forward.1} parent=1 // pred_check_branch
      %24 = sbr.rel (0) target = $region9
    $region8: #{mlp_forward.1} parent=1 // pred_region
      %s26 = ssub.s32 256, 256
      %27 = vsyncadd [#allocation6], %s26
      %s28 = sshll.u32 [#allocation5], 4
      %s29 = int_to_ptr.vmem [resolvable:$true] %s28
      %34 = dma.hbm_to_vmem [thread:$0]  %s1, 256, %s29, [#allocation6], 64, 64, 4
    $region9: #{mlp_forward.1} parent=1 // pred_fallthru
      _
    // Predicated region
    $region10: #{mlp_forward.1} parent=1 // pred_check
      _
    $region11: #{mlp_forward.1} parent=1 // pred_check_branch
      %36 = sbr.rel (0) target = $region13
    $region12: #{mlp_forward.1} parent=1 // pred_region
      _
    $region13: #{mlp_forward.1} parent=1 // pred_fallthru
      _
    // Predicated region
    $region14: #{mlp_forward.1} parent=1 // pred_check
      _
    $region15: #{mlp_forward.1} parent=1 // pred_check_branch
      %38 = sbr.rel (0) target = $region17
    $region16: #{mlp_forward.1} parent=1 // pred_region
      _
    $region17: #{mlp_forward.1} parent=1 // pred_fallthru
      _
    // Predicated region
    $region18: #{mlp_forward.1} parent=1 // pred_check
      _
    $region19: #{mlp_forward.1} parent=1 // pred_check_branch
      %40 = sbr.rel (0) target = $region21
    $region20: #{mlp_forward.1} parent=1 // pred_region
      _
    $region21: #{mlp_forward.1} parent=1 // pred_fallthru
      _
    // Predicated region
    $region22: #{mlp_forward.1} parent=1 // pred_check
      _
    $region23: #{mlp_forward.1} parent=1 // pred_check_branch
      %42 = sbr.rel (0) target = $region25
    $region24: #{mlp_forward.1} parent=1 // pred_region
      %43 = dma.done [#allocation4], 128
    $region25: #{mlp_forward.1} parent=1 // pred_fallthru
      _
    // Predicated region
    $region26: #{mlp_forward.1} parent=1 // pred_check
      _
    $region27: #{mlp_forward.1} parent=1 // pred_check_branch
      %45 = sbr.rel (0) target = $region29
    $region28: #{mlp_forward.1} parent=1 // pred_region
      %46 = dma.done [#allocation6], 256
    $region29: #{mlp_forward.1} parent=1 // pred_fallthru
      _
    %v48 = vld [vmem:[#allocation3] sm:$0xff]
    %v49 = vpack.c.bf16 %v48, %v48
    %v50 = vld [vmem:[#allocation5] sm:$0xf]
    %v51 = vld [vmem:[#allocation5 + $0x4] sm:$0xf]
    %v52 = vld [vmem:[#allocation5 + $0x8] sm:$0xf]
    %v53 = vld [vmem:[#allocation5 + $0xc] sm:$0xf]
    %v54 = vld [vmem:[%s2] sm:$0x1]
    %v56 = vlaneseq
    %v57 = vshrl.u32 %v56, 7
    %v58 = vsub.s32 0, %v57
    %v59 = vrot.slane %v54, %v58
    %v65 = vunpack.c.l.b16 %v50
    %v66 = vunpack.c.l.b16 %v51
    %v67 = vunpack.c.l.b16 %v52
    %v68 = vunpack.c.l.b16 %v53
    %v69 = vpack.c.b16 %v66, %v65
    %v70 = vpack.c.b16 %v68, %v67
    %vm73 = vcmask 261120
    %v75 = vsel %vm73, %v49, 0
    %77 = vmatprep.subr.bf16.mxu0 0
    %78 = vmatpush1.bf16.msra.mxu0 %v69
    %79 = vmatprep.subr.bf16.mxu0 0
    %80 = vmatpush1.bf16.msra.mxu0 %v70
    %81 = vmatprep.subr.bf16.mxu0 0
    %82 = vmatpush1.bf16.msra.mxu0 0
    %83 = vmatprep.subr.bf16.mxu0 0
    %84 = vmatpush1.bf16.msra.mxu0 0
    %85 = vmatprep.subr.bf16.mxu0 0
    %86 = vmatpush1.bf16.msra.mxu0 0
    %87 = vmatprep.subr.bf16.mxu0 0
    %88 = vmatpush1.bf16.msra.mxu0 0
    %89 = vmatprep.subr.bf16.mxu0 0
    %90 = vmatpush1.bf16.msra.mxu0 0
    %91 = vmatprep.subr.bf16.mxu0 0
    %92 = vmatpush1.bf16.msra.mxu0 0
    %93 = vmatprep.subr.bf16.mxu0 0
    %94 = vmatpush1.bf16.msra.mxu0 0
    %95 = vmatprep.subr.bf16.mxu0 0
    %96 = vmatpush1.bf16.msra.mxu0 0
    %97 = vmatprep.subr.bf16.mxu0 0
    %98 = vmatpush1.bf16.msra.mxu0 0
    %99 = vmatprep.subr.bf16.mxu0 0
    %100 = vmatpush1.bf16.msra.mxu0 0
    %101 = vmatprep.subr.bf16.mxu0 0
    %102 = vmatpush1.bf16.msra.mxu0 0
    %103 = vmatprep.subr.bf16.mxu0 0
    %104 = vmatpush1.bf16.msra.mxu0 0
    %105 = vmatprep.subr.bf16.mxu0 0
    %106 = vmatpush1.bf16.msra.mxu0 0
    %107 = vmatprep.subr.bf16.mxu0 0
    %108 = vmatpush1.bf16.msra.mxu0 0
    %109 = vmatprep.mubr.bf16.mxu0 0
    %110 = vmatmul.mubr.bf16.gmra.mrb[0].mxu0 %v75
    %v111 = vpop.f32.mrb[0].mxu0
    %v112 = vadd.f32 %v59, %v111
    %v113 = vpop.f32.mrb[0].mxu0
    %v114 = vpop.f32.mrb[0].mxu0
    %v115 = vpop.f32.mrb[0].mxu0
    %116 = vdwg.mxu0
    %v117 = vmax.f32 %v112, 0.0
    %v118 = vld [vmem:[%s3] sm:$0x1]
    %v120 = vlaneseq
    %v121 = vshrl.u32 %v120, 7
    %v122 = vsub.s32 0, %v121
    %v123 = vrot.slane %v118, %v122
    %v125 = vmul.f32 %v117, %v123
    %v126 = vsel %vm73, %v125, 0.0
    %127 = vadd.xlane.f32.xlu0 %v126
    %v128 = vpop.xlane.xlu0 %127
    %s129 = sld [smem:[#allocation2]]
    %v130 = vstv %s129
    %v131 = vadd.f32 %v128, %v130
    %v132 = vmin.f32 %v131, 0.0
    %v133 = vand.u32 2147483647, %v131
    %v134 = vsub.f32 0.0, %v133
    %v135 = vmul.f32 %v134, 1.442695
    %v136 = vpow.pop %v135
    %v137 = vadd.f32 %v136, 1.0
    %v138 = vlog2.pop %v137
    %v139 = vmul.f32 %v138, 0.6931472
    %v140 = vmul.f32 -0.5, %v136
    %v141 = vadd.f32 %v140, 1.0
    %v142 = vmul.f32 %v141, %v136
    %v143 = vand.u32 2147483647, %v136
    %vm144 = vcmp.lt.f32.partialorder %v143, 0.0004427343
    %v145 = vsel %vm144, %v142, %v139
    %v146 = vsub.f32 %v132, %v145
    %vm147 = vcmask 7168
    %148 = vst.msk [vmem:[%s5] sm:$0xff] %vm147, %v146
    // Predicated region
    $region30: #{mlp_forward.1} parent=1 // pred_check
      _
    $region31: #{mlp_forward.1} parent=1 // pred_check_branch
      %150 = sbr.rel (0) target = $region33
    $region32: #{mlp_forward.1} parent=1 // pred_region
      _
    $region33: #{mlp_forward.1} parent=1 // pred_fallthru
      _
    // Predicated region
    $region34: #{mlp_forward.1} parent=1 // pred_check
      _
    $region35: #{mlp_forward.1} parent=1 // pred_check_branch
      %152 = sbr.rel (0) target = $region37
    $region36: #{mlp_forward.1} parent=1 // pred_region
      _
    $region37: #{mlp_forward.1} parent=1 // pred_fallthru
      _
    %153 = vsyncpa [#allocation4], 1
    %154 = vsyncpa [#allocation6], 1

</llo_original>
